<compile_context>
chip_gen: v5e
topology: v5e:2x2
jax: 0.10.0
libtpu: 0.0.40
codegen_flags: <defaults>
</compile_context>

<pallas_src>
import jax
import jax.numpy as jnp
from jax.experimental import pallas as pl
from jax.experimental.pallas import tpu as pltpu

OUT_PAD = 128  # lane-dense output width (unmasked vst; MXU pads N anyway)


def _classify_kernel(x_ref, cw_ref, w_ref, b_ref, o_ref):
    # x_ref : (TILE_B, C*L)   bf16   batch tile (pipelined, double-buffered)
    # cw_ref: (1, C*L)        f32    conv weight broadcast along L (resident)
    # w_ref : (L, OUT_PAD)    bf16   fc weight, transposed + lane-padded (resident)
    # b_ref : (1, OUT_PAD)    f32    fc bias + folded conv-bias term (resident)
    # o_ref : (TILE_B, OUT_PAD) f32
    L = w_ref.shape[0]
    C = x_ref.shape[1] // L

    # Conv1d(k=1): channel-weighted sum on the VPU, f32 accumulation.
    # Static, lane-aligned 1024-wide slices; unrolled over the 14 channels.
    h = x_ref[:, 0:L] * cw_ref[:, 0:L]          # bf16 * f32 -> f32
    for c in range(1, C):
        lo = c * L
        h = h + x_ref[:, lo:lo + L] * cw_ref[:, lo:lo + L]

    # Linear: single MXU matmul with f32 accumulation.
    y = jnp.dot(h.astype(jnp.bfloat16), w_ref[...],
                preferred_element_type=jnp.float32)
    o_ref[...] = (y + b_ref[...]).astype(o_ref.dtype)


def prepare_params(conv_w, conv_b, fc_w, fc_b):
    """One-time (per-weight) preprocessing — not per-call work in production."""
    C = conv_w.shape[1]
    OUT, L = fc_w.shape
    cw = conv_w.reshape(C).astype(jnp.float32)                        # (C,)
    # cw_row[0, c*L + l] = cw[c]  -> lane-aligned per-channel scale row.
    cw_row = jnp.repeat(cw, L).reshape(1, C * L)                      # (1, C*L) f32
    # fc weight transposed, bf16, zero-padded to OUT_PAD lanes.
    w_pad = jnp.zeros((L, OUT_PAD), jnp.bfloat16)
    w_pad = w_pad.at[:, :OUT].set(jnp.transpose(fc_w).astype(jnp.bfloat16))
    # b_eff[o] = fc_b[o] + conv_b * sum_l fc_w[o, l]   (conv bias fold)
    b_eff = (fc_b + conv_b[0] * jnp.sum(fc_w, axis=1)).astype(jnp.float32)
    b_pad = jnp.zeros((1, OUT_PAD), jnp.float32).at[:, :OUT].set(b_eff)
    return cw_row, w_pad, b_pad


def _pick_tile_b(B, tile_b):
    # Aim for >= 2 grid steps so the "parallel" batch axis can be sharded over
    # v7x's two TensorCores; keep the sublane dim a multiple of 8 (or == B).
    if B <= 8:
        return B                                  # block dim == full dim is legal
    half = pl.cdiv(B, 2)
    half = ((half + 7) // 8) * 8
    return min(tile_b, half)


def classify_network_pallas(x, conv_w, conv_b, fc_w, fc_b, *, tile_b=256):
    """x: (B, 14, 1024) float32 (NCW).  Returns (B, 40) float32."""
    B, C, L = x.shape
    OUT = fc_w.shape[0]
    CL = C * L

    cw_row, w_pad, b_pad = prepare_params(conv_w, conv_b, fc_w, fc_b)

    # bf16 halves the binding x HBM read traffic; accumulation stays f32.
    x2 = x.reshape(B, CL).astype(jnp.bfloat16)   # x2[b, c*L + l] == x[b, c, l]

    TILE_B = _pick_tile_b(B, tile_b)
    grid = (pl.cdiv(B, TILE_B),)

    out_padded = pl.pallas_call(
        _classify_kernel,
        out_shape=jax.ShapeDtypeStruct((B, OUT_PAD), jnp.float32),
        grid_spec=pltpu.PrefetchScalarGridSpec(
            num_scalar_prefetch=0,
            grid=grid,
            in_specs=[
                pl.BlockSpec((TILE_B, CL), lambda i: (i, 0)),   # x tile (pipelined)
                pl.BlockSpec((1, CL), lambda i: (0, 0)),        # conv row, resident
                pl.BlockSpec((L, OUT_PAD), lambda i: (0, 0)),   # fc weight, resident
                pl.BlockSpec((1, OUT_PAD), lambda i: (0, 0)),   # bias, resident
            ],
            out_specs=pl.BlockSpec((TILE_B, OUT_PAD), lambda i: (i, 0)),
        ),
        compiler_params=pltpu.CompilerParams(
            dimension_semantics=("parallel",),    # batch axis -> v7x 2-TC sharding
            vmem_limit_bytes=48 << 20,            # headroom on v5e/v6e, safe on v7x
        ),
    )(x2, cw_row, w_pad, b_pad)

    return out_padded[:, :OUT]


def _reference(x, conv_w, conv_b, fc_w, fc_b):
    # Pure-JAX f32 reference mirroring the PyTorch forward pass.
    h = jnp.einsum("bcl,c->bl", x, conv_w.reshape(-1)) + conv_b[0]   # Conv1d k=1 + squeeze
    return h @ fc_w.T + fc_b                                          # Linear


if __name__ == "__main__":
    B, C, L, OUT = 2, 14, 1024, 40   # layer dims are fixed by the module

    key = jax.random.PRNGKey(0)
    kx, k1, k2, k3, k4 = jax.random.split(key, 5)

    # PyTorch-default-style init: uniform(-1/sqrt(fan_in), 1/sqrt(fan_in)).
    conv_bound = 1.0 / (C ** 0.5)
    fc_bound = 1.0 / (L ** 0.5)
    conv_w = jax.random.uniform(k1, (1, C, 1), jnp.float32, -conv_bound, conv_bound)
    conv_b = jax.random.uniform(k2, (1,), jnp.float32, -conv_bound, conv_bound)
    fc_w = jax.random.uniform(k3, (OUT, L), jnp.float32, -fc_bound, fc_bound)
    fc_b = jax.random.uniform(k4, (OUT,), jnp.float32, -fc_bound, fc_bound)

    x = jax.random.normal(kx, (B, C, L), jnp.float32)

    run = jax.jit(classify_network_pallas)
    out = jax.block_until_ready(run(x, conv_w, conv_b, fc_w, fc_b))

    ref = _reference(x, conv_w, conv_b, fc_w, fc_b)
    assert out.shape == (B, OUT)
    # bf16 inputs/weights (f32 accumulation) -> loosened tolerance vs f32 ref.
    assert jnp.allclose(out, ref, atol=2e-2, rtol=2e-2), "mismatch vs JAX reference"

    print("KERNEL_OK")
</pallas_src>

<mosaic_0001>
module attributes {stable_mosaic.version = 11 : i64} {
  func.func @_classify_kernel(%arg0: i32, %arg1: memref<2x14336xbf16, #tpu.memory_space<vmem>>, %arg2: memref<1x14336xf32, #tpu.memory_space<vmem>>, %arg3: memref<1024x128xbf16, #tpu.memory_space<vmem>>, %arg4: memref<1x128xf32, #tpu.memory_space<vmem>>, %arg5: memref<2x128xf32, #tpu.memory_space<vmem>>) attributes {dimension_semantics = [#tpu.dimension_semantics<parallel>], iteration_bounds = array<i64: 1>, scalar_prefetch = 0 : i64, scratch_operands = 0 : i64, tpu.core_type = #tpu.core_type<tc>, window_params = [{transform_indices = @transform_0, window_bounds = array<i64: 2, 14336>}, {pipeline_mode = #tpu.pipeline_mode<synchronous>, transform_indices = @transform_1, window_bounds = array<i64: 1, 14336>}, {pipeline_mode = #tpu.pipeline_mode<synchronous>, transform_indices = @transform_2, window_bounds = array<i64: 1024, 128>}, {pipeline_mode = #tpu.pipeline_mode<synchronous>, transform_indices = @transform_3, window_bounds = array<i64: 1, 128>}, {transform_indices = @transform_4, window_bounds = array<i64: 2, 128>}]} {
    %c0 = arith.constant 0 : index
    %c0_0 = arith.constant 0 : index
    %0 = vector.load %arg1[%c0, %c0_0] : memref<2x14336xbf16, #tpu.memory_space<vmem>>, vector<2x1024xbf16>
    %c0_1 = arith.constant 0 : index
    %c0_2 = arith.constant 0 : index
    %1 = vector.load %arg2[%c0_1, %c0_2] : memref<1x14336xf32, #tpu.memory_space<vmem>>, vector<1x1024xf32>
    %2 = arith.extf %0 : vector<2x1024xbf16> to vector<2x1024xf32>
    %3 = vector.broadcast %1 : vector<1x1024xf32> to vector<2x1024xf32>
    %4 = arith.mulf %2, %3 : vector<2x1024xf32>
    %c0_3 = arith.constant 0 : index
    %c1024 = arith.constant 1024 : index
    %5 = vector.load %arg1[%c0_3, %c1024] : memref<2x14336xbf16, #tpu.memory_space<vmem>>, vector<2x1024xbf16>
    %c0_4 = arith.constant 0 : index
    %c1024_5 = arith.constant 1024 : index
    %6 = vector.load %arg2[%c0_4, %c1024_5] : memref<1x14336xf32, #tpu.memory_space<vmem>>, vector<1x1024xf32>
    %7 = arith.extf %5 : vector<2x1024xbf16> to vector<2x1024xf32>
    %8 = vector.broadcast %6 : vector<1x1024xf32> to vector<2x1024xf32>
    %9 = arith.mulf %7, %8 : vector<2x1024xf32>
    %10 = arith.addf %4, %9 : vector<2x1024xf32>
    %c0_6 = arith.constant 0 : index
    %c2048 = arith.constant 2048 : index
    %11 = vector.load %arg1[%c0_6, %c2048] : memref<2x14336xbf16, #tpu.memory_space<vmem>>, vector<2x1024xbf16>
    %c0_7 = arith.constant 0 : index
    %c2048_8 = arith.constant 2048 : index
    %12 = vector.load %arg2[%c0_7, %c2048_8] : memref<1x14336xf32, #tpu.memory_space<vmem>>, vector<1x1024xf32>
    %13 = arith.extf %11 : vector<2x1024xbf16> to vector<2x1024xf32>
    %14 = vector.broadcast %12 : vector<1x1024xf32> to vector<2x1024xf32>
    %15 = arith.mulf %13, %14 : vector<2x1024xf32>
    %16 = arith.addf %10, %15 : vector<2x1024xf32>
    %c0_9 = arith.constant 0 : index
    %c3072 = arith.constant 3072 : index
    %17 = vector.load %arg1[%c0_9, %c3072] : memref<2x14336xbf16, #tpu.memory_space<vmem>>, vector<2x1024xbf16>
    %c0_10 = arith.constant 0 : index
    %c3072_11 = arith.constant 3072 : index
    %18 = vector.load %arg2[%c0_10, %c3072_11] : memref<1x14336xf32, #tpu.memory_space<vmem>>, vector<1x1024xf32>
    %19 = arith.extf %17 : vector<2x1024xbf16> to vector<2x1024xf32>
    %20 = vector.broadcast %18 : vector<1x1024xf32> to vector<2x1024xf32>
    %21 = arith.mulf %19, %20 : vector<2x1024xf32>
    %22 = arith.addf %16, %21 : vector<2x1024xf32>
    %c0_12 = arith.constant 0 : index
    %c4096 = arith.constant 4096 : index
    %23 = vector.load %arg1[%c0_12, %c4096] : memref<2x14336xbf16, #tpu.memory_space<vmem>>, vector<2x1024xbf16>
    %c0_13 = arith.constant 0 : index
    %c4096_14 = arith.constant 4096 : index
    %24 = vector.load %arg2[%c0_13, %c4096_14] : memref<1x14336xf32, #tpu.memory_space<vmem>>, vector<1x1024xf32>
    %25 = arith.extf %23 : vector<2x1024xbf16> to vector<2x1024xf32>
    %26 = vector.broadcast %24 : vector<1x1024xf32> to vector<2x1024xf32>
    %27 = arith.mulf %25, %26 : vector<2x1024xf32>
    %28 = arith.addf %22, %27 : vector<2x1024xf32>
    %c0_15 = arith.constant 0 : index
    %c5120 = arith.constant 5120 : index
    %29 = vector.load %arg1[%c0_15, %c5120] : memref<2x14336xbf16, #tpu.memory_space<vmem>>, vector<2x1024xbf16>
    %c0_16 = arith.constant 0 : index
    %c5120_17 = arith.constant 5120 : index
    %30 = vector.load %arg2[%c0_16, %c5120_17] : memref<1x14336xf32, #tpu.memory_space<vmem>>, vector<1x1024xf32>
    %31 = arith.extf %29 : vector<2x1024xbf16> to vector<2x1024xf32>
    %32 = vector.broadcast %30 : vector<1x1024xf32> to vector<2x1024xf32>
    %33 = arith.mulf %31, %32 : vector<2x1024xf32>
    %34 = arith.addf %28, %33 : vector<2x1024xf32>
    %c0_18 = arith.constant 0 : index
    %c6144 = arith.constant 6144 : index
    %35 = vector.load %arg1[%c0_18, %c6144] : memref<2x14336xbf16, #tpu.memory_space<vmem>>, vector<2x1024xbf16>
    %c0_19 = arith.constant 0 : index
    %c6144_20 = arith.constant 6144 : index
    %36 = vector.load %arg2[%c0_19, %c6144_20] : memref<1x14336xf32, #tpu.memory_space<vmem>>, vector<1x1024xf32>
    %37 = arith.extf %35 : vector<2x1024xbf16> to vector<2x1024xf32>
    %38 = vector.broadcast %36 : vector<1x1024xf32> to vector<2x1024xf32>
    %39 = arith.mulf %37, %38 : vector<2x1024xf32>
    %40 = arith.addf %34, %39 : vector<2x1024xf32>
    %c0_21 = arith.constant 0 : index
    %c7168 = arith.constant 7168 : index
    %41 = vector.load %arg1[%c0_21, %c7168] : memref<2x14336xbf16, #tpu.memory_space<vmem>>, vector<2x1024xbf16>
    %c0_22 = arith.constant 0 : index
    %c7168_23 = arith.constant 7168 : index
    %42 = vector.load %arg2[%c0_22, %c7168_23] : memref<1x14336xf32, #tpu.memory_space<vmem>>, vector<1x1024xf32>
    %43 = arith.extf %41 : vector<2x1024xbf16> to vector<2x1024xf32>
    %44 = vector.broadcast %42 : vector<1x1024xf32> to vector<2x1024xf32>
    %45 = arith.mulf %43, %44 : vector<2x1024xf32>
    %46 = arith.addf %40, %45 : vector<2x1024xf32>
    %c0_24 = arith.constant 0 : index
    %c8192 = arith.constant 8192 : index
    %47 = vector.load %arg1[%c0_24, %c8192] : memref<2x14336xbf16, #tpu.memory_space<vmem>>, vector<2x1024xbf16>
    %c0_25 = arith.constant 0 : index
    %c8192_26 = arith.constant 8192 : index
    %48 = vector.load %arg2[%c0_25, %c8192_26] : memref<1x14336xf32, #tpu.memory_space<vmem>>, vector<1x1024xf32>
    %49 = arith.extf %47 : vector<2x1024xbf16> to vector<2x1024xf32>
    %50 = vector.broadcast %48 : vector<1x1024xf32> to vector<2x1024xf32>
    %51 = arith.mulf %49, %50 : vector<2x1024xf32>
    %52 = arith.addf %46, %51 : vector<2x1024xf32>
    %c0_27 = arith.constant 0 : index
    %c9216 = arith.constant 9216 : index
    %53 = vector.load %arg1[%c0_27, %c9216] : memref<2x14336xbf16, #tpu.memory_space<vmem>>, vector<2x1024xbf16>
    %c0_28 = arith.constant 0 : index
    %c9216_29 = arith.constant 9216 : index
    %54 = vector.load %arg2[%c0_28, %c9216_29] : memref<1x14336xf32, #tpu.memory_space<vmem>>, vector<1x1024xf32>
    %55 = arith.extf %53 : vector<2x1024xbf16> to vector<2x1024xf32>
    %56 = vector.broadcast %54 : vector<1x1024xf32> to vector<2x1024xf32>
    %57 = arith.mulf %55, %56 : vector<2x1024xf32>
    %58 = arith.addf %52, %57 : vector<2x1024xf32>
    %c0_30 = arith.constant 0 : index
    %c10240 = arith.constant 10240 : index
    %59 = vector.load %arg1[%c0_30, %c10240] : memref<2x14336xbf16, #tpu.memory_space<vmem>>, vector<2x1024xbf16>
    %c0_31 = arith.constant 0 : index
    %c10240_32 = arith.constant 10240 : index
    %60 = vector.load %arg2[%c0_31, %c10240_32] : memref<1x14336xf32, #tpu.memory_space<vmem>>, vector<1x1024xf32>
    %61 = arith.extf %59 : vector<2x1024xbf16> to vector<2x1024xf32>
    %62 = vector.broadcast %60 : vector<1x1024xf32> to vector<2x1024xf32>
    %63 = arith.mulf %61, %62 : vector<2x1024xf32>
    %64 = arith.addf %58, %63 : vector<2x1024xf32>
    %c0_33 = arith.constant 0 : index
    %c11264 = arith.constant 11264 : index
    %65 = vector.load %arg1[%c0_33, %c11264] : memref<2x14336xbf16, #tpu.memory_space<vmem>>, vector<2x1024xbf16>
    %c0_34 = arith.constant 0 : index
    %c11264_35 = arith.constant 11264 : index
    %66 = vector.load %arg2[%c0_34, %c11264_35] : memref<1x14336xf32, #tpu.memory_space<vmem>>, vector<1x1024xf32>
    %67 = arith.extf %65 : vector<2x1024xbf16> to vector<2x1024xf32>
    %68 = vector.broadcast %66 : vector<1x1024xf32> to vector<2x1024xf32>
    %69 = arith.mulf %67, %68 : vector<2x1024xf32>
    %70 = arith.addf %64, %69 : vector<2x1024xf32>
    %c0_36 = arith.constant 0 : index
    %c12288 = arith.constant 12288 : index
    %71 = vector.load %arg1[%c0_36, %c12288] : memref<2x14336xbf16, #tpu.memory_space<vmem>>, vector<2x1024xbf16>
    %c0_37 = arith.constant 0 : index
    %c12288_38 = arith.constant 12288 : index
    %72 = vector.load %arg2[%c0_37, %c12288_38] : memref<1x14336xf32, #tpu.memory_space<vmem>>, vector<1x1024xf32>
    %73 = arith.extf %71 : vector<2x1024xbf16> to vector<2x1024xf32>
    %74 = vector.broadcast %72 : vector<1x1024xf32> to vector<2x1024xf32>
    %75 = arith.mulf %73, %74 : vector<2x1024xf32>
    %76 = arith.addf %70, %75 : vector<2x1024xf32>
    %c0_39 = arith.constant 0 : index
    %c13312 = arith.constant 13312 : index
    %77 = vector.load %arg1[%c0_39, %c13312] : memref<2x14336xbf16, #tpu.memory_space<vmem>>, vector<2x1024xbf16>
    %c0_40 = arith.constant 0 : index
    %c13312_41 = arith.constant 13312 : index
    %78 = vector.load %arg2[%c0_40, %c13312_41] : memref<1x14336xf32, #tpu.memory_space<vmem>>, vector<1x1024xf32>
    %79 = arith.extf %77 : vector<2x1024xbf16> to vector<2x1024xf32>
    %80 = vector.broadcast %78 : vector<1x1024xf32> to vector<2x1024xf32>
    %81 = arith.mulf %79, %80 : vector<2x1024xf32>
    %82 = arith.addf %76, %81 : vector<2x1024xf32>
    %83 = arith.truncf %82 : vector<2x1024xf32> to vector<2x1024xbf16>
    %c0_42 = arith.constant 0 : index
    %c0_43 = arith.constant 0 : index
    %84 = vector.load %arg3[%c0_42, %c0_43] : memref<1024x128xbf16, #tpu.memory_space<vmem>>, vector<1024x128xbf16>
    %cst = arith.constant dense<0.000000e+00> : vector<2x128xf32>
    %85 = tpu.matmul %83, %84, %cst {dimension_numbers = #tpu.dot_dimension_numbers<[1], [0], [0], [1], [0, 0, 1, 1], [], []>} : vector<2x1024xbf16>, vector<1024x128xbf16>, vector<2x128xf32> -> vector<2x128xf32>
    %c0_44 = arith.constant 0 : index
    %c0_45 = arith.constant 0 : index
    %86 = vector.load %arg4[%c0_44, %c0_45] : memref<1x128xf32, #tpu.memory_space<vmem>>, vector<1x128xf32>
    %87 = vector.broadcast %86 : vector<1x128xf32> to vector<2x128xf32>
    %88 = arith.addf %85, %87 : vector<2x128xf32>
    %c0_46 = arith.constant 0 : index
    %c0_47 = arith.constant 0 : index
    %89 = vector.load %arg5[%c0_46, %c0_47] : memref<2x128xf32, #tpu.memory_space<vmem>>, vector<2x128xf32>
    tpu.vector_store %arg5[%c0_46, %c0_47], %88 {strides = array<i32>} : memref<2x128xf32, #tpu.memory_space<vmem>>, vector<2x128xf32>,
    return
  }
  func.func @transform_0(%arg0: i32) -> (i32, i32) {
    %c0_i32 = arith.constant 0 : i32
    %c0_i32_0 = arith.constant 0 : i32
    return %arg0, %c0_i32 : i32, i32
  }
  func.func @transform_1(%arg0: i32) -> (i32, i32) {
    %c0_i32 = arith.constant 0 : i32
    %c0_i32_0 = arith.constant 0 : i32
    %c0_i32_1 = arith.constant 0 : i32
    return %c0_i32, %c0_i32_0 : i32, i32
  }
  func.func @transform_2(%arg0: i32) -> (i32, i32) {
    %c0_i32 = arith.constant 0 : i32
    %c0_i32_0 = arith.constant 0 : i32
    %c0_i32_1 = arith.constant 0 : i32
    return %c0_i32, %c0_i32_0 : i32, i32
  }
  func.func @transform_3(%arg0: i32) -> (i32, i32) {
    %c0_i32 = arith.constant 0 : i32
    %c0_i32_0 = arith.constant 0 : i32
    %c0_i32_1 = arith.constant 0 : i32
    return %c0_i32, %c0_i32_0 : i32, i32
  }
  func.func @transform_4(%arg0: i32) -> (i32, i32) {
    %c0_i32 = arith.constant 0 : i32
    %c0_i32_0 = arith.constant 0 : i32
    return %arg0, %c0_i32 : i32, i32
  }
}

</mosaic_0001>

<llo_original>
// kernel: classify_network_pallas.1
$region0: #{classify_network_pallas.1}
  #allocation0 [shape = 'u32[]', space=smem, size = 0x4, offset = 0x4, fixed_abs, tag = 'smem constant byte address 0x4 - core index']
  #allocation1 [shape = 'u32[72,128]{1,0:T(1,128)}', space=vmem, size = 0x9000, scoped, tag = 'internal scratch']
  %s0 = inlined_call_operand.vmem [shape: bf16[2,14336], index: 0, kind: input, shape index: {}]
  %s1 = inlined_call_operand.vmem [shape: f32[1,14336], index: 1, kind: input, shape index: {}]
  %s2 = inlined_call_operand.vmem [shape: bf16[1024,128], index: 2, kind: input, shape index: {}]
  %s3 = inlined_call_operand.vmem [shape: f32[1,128], index: 3, kind: input, shape index: {}]
  %s4 = inlined_call_operand.hbm [shape: f32[2,128], index: 4, kind: output, shape index: {}]
  %s5 = sld [smem:[#allocation0]]
  $region26: #{classify_network_pallas.1} parent=0
    _
  %s7 = ssub.s32 1, %s5
  %s8 = scalar_select 0, %s7, %s5
  $region1: #{classify_network_pallas.1} parent=0
    #allocation2 [shape = 'u8[1024]{0}', space=vmem, size = 0x400, scoped, tag = 'output window, operand 0, single buffered']
    #allocation3 [shape = 's32[1]{0}', space=sflag, size = 0x4, scoped, tag = 'scoped memory for classify_network_pallas.1']
    %9 = vsyncpa [#allocation3], 0
    // Predicated region
    $region2: #{classify_network_pallas.1} parent=1 // pred_check
      _
    $region3: #{classify_network_pallas.1} parent=1 // pred_check_branch
      %11 = sbr.rel (0) target = $region5
    $region4: #{classify_network_pallas.1} parent=1 // pred_region
      _
    $region5: #{classify_network_pallas.1} parent=1 // pred_fallthru
      _
    // Predicated region
    $region6: #{classify_network_pallas.1} parent=1 // pred_check
      _
    $region7: #{classify_network_pallas.1} parent=1 // pred_check_branch
      %13 = sbr.rel (0) target = $region9
    $region8: #{classify_network_pallas.1} parent=1 // pred_region
      _
    $region9: #{classify_network_pallas.1} parent=1 // pred_fallthru
      _
    // Predicated region
    $region10: #{classify_network_pallas.1} parent=1 // pred_check
      _
    $region11: #{classify_network_pallas.1} parent=1 // pred_check_branch
      %15 = sbr.rel (0) target = $region13
    $region12: #{classify_network_pallas.1} parent=1 // pred_region
      _
    $region13: #{classify_network_pallas.1} parent=1 // pred_fallthru
      _
    // Predicated region
    $region14: #{classify_network_pallas.1} parent=1 // pred_check
      _
    $region15: #{classify_network_pallas.1} parent=1 // pred_check_branch
      %17 = sbr.rel (0) target = $region17
    $region16: #{classify_network_pallas.1} parent=1 // pred_region
      _
    $region17: #{classify_network_pallas.1} parent=1 // pred_fallthru
      _
    %v18 = vld [vmem:[%s0] sm:$0xff]
    %v19 = vld [vmem:[%s1] sm:$0xff]
    %v20 = vunpack.c.l.bf16 %v18
    %v21 = vunpack.c.h.bf16 %v18
    %v23 = vperm.slane %v19, 0
    %v24 = vperm.slane %v19, 1
    %v25 = vperm.slane %v19, 2
    %v26 = vperm.slane %v19, 3
    %v27 = vperm.slane %v19, 4
    %v28 = vperm.slane %v19, 5
    %v29 = vperm.slane %v19, 6
    %v30 = vperm.slane %v19, 7
    %v31 = vrot.slane %v24, 6
    %v32 = vrot.slane %v25, 4
    %v33 = vrot.slane %v26, 2
    %v34 = vrot.slane %v28, 6
    %v35 = vrot.slane %v29, 4
    %v36 = vrot.slane %v30, 2
    %vm37 = vcmask 1041408
    %v38 = vsel %vm37, %v23, %v31
    %vm39 = vcmask 1045508
    %v40 = vsel %vm39, %v32, %v33
    %vm41 = vcmask 1043456
    %v42 = vsel %vm41, %v38, %v40
    %v43 = vsel %vm37, %v27, %v34
    %v44 = vsel %vm39, %v35, %v36
    %v45 = vsel %vm41, %v43, %v44
    %v48 = vmul.f32 %v20, %v42
    %v49 = vmul.f32 %v21, %v45
    %v50 = vld [vmem:[%s0 + $0x8] sm:$0xff]
    %v51 = vld [vmem:[%s1 + $0x8] sm:$0xff]
    %v52 = vunpack.c.l.bf16 %v50
    %v53 = vunpack.c.h.bf16 %v50
    %v55 = vperm.slane %v51, 0
    %v56 = vperm.slane %v51, 1
    %v57 = vperm.slane %v51, 2
    %v58 = vperm.slane %v51, 3
    %v59 = vperm.slane %v51, 4
    %v60 = vperm.slane %v51, 5
    %v61 = vperm.slane %v51, 6
    %v62 = vperm.slane %v51, 7
    %v63 = vrot.slane %v56, 6
    %v64 = vrot.slane %v57, 4
    %v65 = vrot.slane %v58, 2
    %v66 = vrot.slane %v60, 6
    %v67 = vrot.slane %v61, 4
    %v68 = vrot.slane %v62, 2
    %v69 = vsel %vm37, %v55, %v63
    %v70 = vsel %vm39, %v64, %v65
    %v71 = vsel %vm41, %v69, %v70
    %v72 = vsel %vm37, %v59, %v66
    %v73 = vsel %vm39, %v67, %v68
    %v74 = vsel %vm41, %v72, %v73
    %v77 = vmul.f32 %v52, %v71
    %v78 = vmul.f32 %v53, %v74
    %v79 = vadd.f32 %v48, %v77
    %v80 = vadd.f32 %v49, %v78
    %v81 = vld [vmem:[%s0 + $0x10] sm:$0xff]
    %v82 = vld [vmem:[%s1 + $0x10] sm:$0xff]
    %v83 = vunpack.c.l.bf16 %v81
    %v84 = vunpack.c.h.bf16 %v81
    %v86 = vperm.slane %v82, 0
    %v87 = vperm.slane %v82, 1
    %v88 = vperm.slane %v82, 2
    %v89 = vperm.slane %v82, 3
    %v90 = vperm.slane %v82, 4
    %v91 = vperm.slane %v82, 5
    %v92 = vperm.slane %v82, 6
    %v93 = vperm.slane %v82, 7
    %v94 = vrot.slane %v87, 6
    %v95 = vrot.slane %v88, 4
    %v96 = vrot.slane %v89, 2
    %v97 = vrot.slane %v91, 6
    %v98 = vrot.slane %v92, 4
    %v99 = vrot.slane %v93, 2
    %v100 = vsel %vm37, %v86, %v94
    %v101 = vsel %vm39, %v95, %v96
    %v102 = vsel %vm41, %v100, %v101
    %v103 = vsel %vm37, %v90, %v97
    %v104 = vsel %vm39, %v98, %v99
    %v105 = vsel %vm41, %v103, %v104
    %v108 = vmul.f32 %v83, %v102
    %v109 = vmul.f32 %v84, %v105
    %v110 = vadd.f32 %v79, %v108
    %v111 = vadd.f32 %v80, %v109
    %v112 = vld [vmem:[%s0 + $0x18] sm:$0xff]
    %v113 = vld [vmem:[%s1 + $0x18] sm:$0xff]
    %v114 = vunpack.c.l.bf16 %v112
    %v115 = vunpack.c.h.bf16 %v112
    %v117 = vperm.slane %v113, 0
    %v118 = vperm.slane %v113, 1
    %v119 = vperm.slane %v113, 2
    %v120 = vperm.slane %v113, 3
    %v121 = vperm.slane %v113, 4
    %v122 = vperm.slane %v113, 5
    %v123 = vperm.slane %v113, 6
    %v124 = vperm.slane %v113, 7
    %v125 = vrot.slane %v118, 6
    %v126 = vrot.slane %v119, 4
    %v127 = vrot.slane %v120, 2
    %v128 = vrot.slane %v122, 6
    %v129 = vrot.slane %v123, 4
    %v130 = vrot.slane %v124, 2
    %v131 = vsel %vm37, %v117, %v125
    %v132 = vsel %vm39, %v126, %v127
    %v133 = vsel %vm41, %v131, %v132
    %v134 = vsel %vm37, %v121, %v128
    %v135 = vsel %vm39, %v129, %v130
    %v136 = vsel %vm41, %v134, %v135
    %v139 = vmul.f32 %v114, %v133
    %v140 = vmul.f32 %v115, %v136
    %v141 = vadd.f32 %v110, %v139
    %v142 = vadd.f32 %v111, %v140
    %v143 = vld [vmem:[%s0 + $0x20] sm:$0xff]
    %v144 = vld [vmem:[%s1 + $0x20] sm:$0xff]
    %v145 = vunpack.c.l.bf16 %v143
    %v146 = vunpack.c.h.bf16 %v143
    %v148 = vperm.slane %v144, 0
    %v149 = vperm.slane %v144, 1
    %v150 = vperm.slane %v144, 2
    %v151 = vperm.slane %v144, 3
    %v152 = vperm.slane %v144, 4
    %v153 = vperm.slane %v144, 5
    %v154 = vperm.slane %v144, 6
    %v155 = vperm.slane %v144, 7
    %v156 = vrot.slane %v149, 6
    %v157 = vrot.slane %v150, 4
    %v158 = vrot.slane %v151, 2
    %v159 = vrot.slane %v153, 6
    %v160 = vrot.slane %v154, 4
    %v161 = vrot.slane %v155, 2
    %v162 = vsel %vm37, %v148, %v156
    %v163 = vsel %vm39, %v157, %v158
    %v164 = vsel %vm41, %v162, %v163
    %v165 = vsel %vm37, %v152, %v159
    %v166 = vsel %vm39, %v160, %v161
    %v167 = vsel %vm41, %v165, %v166
    %v170 = vmul.f32 %v145, %v164
    %v171 = vmul.f32 %v146, %v167
    %v172 = vadd.f32 %v141, %v170
    %v173 = vadd.f32 %v142, %v171
    %v174 = vld [vmem:[%s0 + $0x28] sm:$0xff]
    %v175 = vld [vmem:[%s1 + $0x28] sm:$0xff]
    %v176 = vunpack.c.l.bf16 %v174
    %v177 = vunpack.c.h.bf16 %v174
    %v179 = vperm.slane %v175, 0
    %v180 = vperm.slane %v175, 1
    %v181 = vperm.slane %v175, 2
    %v182 = vperm.slane %v175, 3
    %v183 = vperm.slane %v175, 4
    %v184 = vperm.slane %v175, 5
    %v185 = vperm.slane %v175, 6
    %v186 = vperm.slane %v175, 7
    %v187 = vrot.slane %v180, 6
    %v188 = vrot.slane %v181, 4
    %v189 = vrot.slane %v182, 2
    %v190 = vrot.slane %v184, 6
    %v191 = vrot.slane %v185, 4
    %v192 = vrot.slane %v186, 2
    %v193 = vsel %vm37, %v179, %v187
    %v194 = vsel %vm39, %v188, %v189
    %v195 = vsel %vm41, %v193, %v194
    %v196 = vsel %vm37, %v183, %v190
    %v197 = vsel %vm39, %v191, %v192
    %v198 = vsel %vm41, %v196, %v197
    %v201 = vmul.f32 %v176, %v195
    %v202 = vmul.f32 %v177, %v198
    %v203 = vadd.f32 %v172, %v201
    %v204 = vadd.f32 %v173, %v202
    %v205 = vld [vmem:[%s0 + $0x30] sm:$0xff]
    %v206 = vld [vmem:[%s1 + $0x30] sm:$0xff]
    %v207 = vunpack.c.l.bf16 %v205
    %v208 = vunpack.c.h.bf16 %v205
    %v210 = vperm.slane %v206, 0
    %v211 = vperm.slane %v206, 1
    %v212 = vperm.slane %v206, 2
    %v213 = vperm.slane %v206, 3
    %v214 = vperm.slane %v206, 4
    %v215 = vperm.slane %v206, 5
    %v216 = vperm.slane %v206, 6
    %v217 = vperm.slane %v206, 7
    %v218 = vrot.slane %v211, 6
    %v219 = vrot.slane %v212, 4
    %v220 = vrot.slane %v213, 2
    %v221 = vrot.slane %v215, 6
    %v222 = vrot.slane %v216, 4
    %v223 = vrot.slane %v217, 2
    %v224 = vsel %vm37, %v210, %v218
    %v225 = vsel %vm39, %v219, %v220
    %v226 = vsel %vm41, %v224, %v225
    %v227 = vsel %vm37, %v214, %v221
    %v228 = vsel %vm39, %v222, %v223
    %v229 = vsel %vm41, %v227, %v228
    %v232 = vmul.f32 %v207, %v226
    %v233 = vmul.f32 %v208, %v229
    %v234 = vadd.f32 %v203, %v232
    %v235 = vadd.f32 %v204, %v233
    %v236 = vld [vmem:[%s0 + $0x38] sm:$0xff]
    %v237 = vld [vmem:[%s1 + $0x38] sm:$0xff]
    %v238 = vunpack.c.l.bf16 %v236
    %v239 = vunpack.c.h.bf16 %v236
    %v241 = vperm.slane %v237, 0
    %v242 = vperm.slane %v237, 1
    %v243 = vperm.slane %v237, 2
    %v244 = vperm.slane %v237, 3
    %v245 = vperm.slane %v237, 4
    %v246 = vperm.slane %v237, 5
    %v247 = vperm.slane %v237, 6
    %v248 = vperm.slane %v237, 7
    %v249 = vrot.slane %v242, 6
    %v250 = vrot.slane %v243, 4
    %v251 = vrot.slane %v244, 2
    %v252 = vrot.slane %v246, 6
    %v253 = vrot.slane %v247, 4
    %v254 = vrot.slane %v248, 2
    %v255 = vsel %vm37, %v241, %v249
    %v256 = vsel %vm39, %v250, %v251
    %v257 = vsel %vm41, %v255, %v256
    %v258 = vsel %vm37, %v245, %v252
    %v259 = vsel %vm39, %v253, %v254
    %v260 = vsel %vm41, %v258, %v259
    %v263 = vmul.f32 %v238, %v257
    %v264 = vmul.f32 %v239, %v260
    %v265 = vadd.f32 %v234, %v263
    %v266 = vadd.f32 %v235, %v264
    %v267 = vld [vmem:[%s0 + $0x40] sm:$0xff]
    %v268 = vld [vmem:[%s1 + $0x40] sm:$0xff]
    %v269 = vunpack.c.l.bf16 %v267
    %v270 = vunpack.c.h.bf16 %v267
    %v272 = vperm.slane %v268, 0
    %v273 = vperm.slane %v268, 1
    %v274 = vperm.slane %v268, 2
    %v275 = vperm.slane %v268, 3
    %v276 = vperm.slane %v268, 4
    %v277 = vperm.slane %v268, 5
    %v278 = vperm.slane %v268, 6
    %v279 = vperm.slane %v268, 7
    %v280 = vrot.slane %v273, 6
    %v281 = vrot.slane %v274, 4
    %v282 = vrot.slane %v275, 2
    %v283 = vrot.slane %v277, 6
    %v284 = vrot.slane %v278, 4
    %v285 = vrot.slane %v279, 2
    %v286 = vsel %vm37, %v272, %v280
    %v287 = vsel %vm39, %v281, %v282
    %v288 = vsel %vm41, %v286, %v287
    %v289 = vsel %vm37, %v276, %v283
    %v290 = vsel %vm39, %v284, %v285
    %v291 = vsel %vm41, %v289, %v290
    %v294 = vmul.f32 %v269, %v288
    %v295 = vmul.f32 %v270, %v291
    %v296 = vadd.f32 %v265, %v294
    %v297 = vadd.f32 %v266, %v295
    %v298 = vld [vmem:[%s0 + $0x48] sm:$0xff]
    %v299 = vld [vmem:[%s1 + $0x48] sm:$0xff]
    %v300 = vunpack.c.l.bf16 %v298
    %v301 = vunpack.c.h.bf16 %v298
    %v303 = vperm.slane %v299, 0
    %v304 = vperm.slane %v299, 1
    %v305 = vperm.slane %v299, 2
    %v306 = vperm.slane %v299, 3
    %v307 = vperm.slane %v299, 4
    %v308 = vperm.slane %v299, 5
    %v309 = vperm.slane %v299, 6
    %v310 = vperm.slane %v299, 7
    %v311 = vrot.slane %v304, 6
    %v312 = vrot.slane %v305, 4
    %v313 = vrot.slane %v306, 2
    %v314 = vrot.slane %v308, 6
    %v315 = vrot.slane %v309, 4
    %v316 = vrot.slane %v310, 2
    %v317 = vsel %vm37, %v303, %v311
    %v318 = vsel %vm39, %v312, %v313
    %v319 = vsel %vm41, %v317, %v318
    %v320 = vsel %vm37, %v307, %v314
    %v321 = vsel %vm39, %v315, %v316
    %v322 = vsel %vm41, %v320, %v321
    %v325 = vmul.f32 %v300, %v319
    %v326 = vmul.f32 %v301, %v322
    %v327 = vadd.f32 %v296, %v325
    %v328 = vadd.f32 %v297, %v326
    %v329 = vld [vmem:[%s0 + $0x50] sm:$0xff]
    %v330 = vld [vmem:[%s1 + $0x50] sm:$0xff]
    %v331 = vunpack.c.l.bf16 %v329
    %v332 = vunpack.c.h.bf16 %v329
    %v334 = vperm.slane %v330, 0
    %v335 = vperm.slane %v330, 1
    %v336 = vperm.slane %v330, 2
    %v337 = vperm.slane %v330, 3
    %v338 = vperm.slane %v330, 4
    %v339 = vperm.slane %v330, 5
    %v340 = vperm.slane %v330, 6
    %v341 = vperm.slane %v330, 7
    %v342 = vrot.slane %v335, 6
    %v343 = vrot.slane %v336, 4
    %v344 = vrot.slane %v337, 2
    %v345 = vrot.slane %v339, 6
    %v346 = vrot.slane %v340, 4
    %v347 = vrot.slane %v341, 2
    %v348 = vsel %vm37, %v334, %v342
    %v349 = vsel %vm39, %v343, %v344
    %v350 = vsel %vm41, %v348, %v349
    %v351 = vsel %vm37, %v338, %v345
    %v352 = vsel %vm39, %v346, %v347
    %v353 = vsel %vm41, %v351, %v352
    %v356 = vmul.f32 %v331, %v350
    %v357 = vmul.f32 %v332, %v353
    %v358 = vadd.f32 %v327, %v356
    %v359 = vadd.f32 %v328, %v357
    %v360 = vld [vmem:[%s0 + $0x58] sm:$0xff]
    %v361 = vld [vmem:[%s1 + $0x58] sm:$0xff]
    %v362 = vunpack.c.l.bf16 %v360
    %v363 = vunpack.c.h.bf16 %v360
    %v365 = vperm.slane %v361, 0
    %v366 = vperm.slane %v361, 1
    %v367 = vperm.slane %v361, 2
    %v368 = vperm.slane %v361, 3
    %v369 = vperm.slane %v361, 4
    %v370 = vperm.slane %v361, 5
    %v371 = vperm.slane %v361, 6
    %v372 = vperm.slane %v361, 7
    %v373 = vrot.slane %v366, 6
    %v374 = vrot.slane %v367, 4
    %v375 = vrot.slane %v368, 2
    %v376 = vrot.slane %v370, 6
    %v377 = vrot.slane %v371, 4
    %v378 = vrot.slane %v372, 2
    %v379 = vsel %vm37, %v365, %v373
    %v380 = vsel %vm39, %v374, %v375
    %v381 = vsel %vm41, %v379, %v380
    %v382 = vsel %vm37, %v369, %v376
    %v383 = vsel %vm39, %v377, %v378
    %v384 = vsel %vm41, %v382, %v383
    %v387 = vmul.f32 %v362, %v381
    %v388 = vmul.f32 %v363, %v384
    %v389 = vadd.f32 %v358, %v387
    %v390 = vadd.f32 %v359, %v388
    %v391 = vld [vmem:[%s0 + $0x60] sm:$0xff]
    %v392 = vld [vmem:[%s1 + $0x60] sm:$0xff]
    %v393 = vunpack.c.l.bf16 %v391
    %v394 = vunpack.c.h.bf16 %v391
    %v396 = vperm.slane %v392, 0
    %v397 = vperm.slane %v392, 1
    %v398 = vperm.slane %v392, 2
    %v399 = vperm.slane %v392, 3
    %v400 = vperm.slane %v392, 4
    %v401 = vperm.slane %v392, 5
    %v402 = vperm.slane %v392, 6
    %v403 = vperm.slane %v392, 7
    %v404 = vrot.slane %v397, 6
    %v405 = vrot.slane %v398, 4
    %v406 = vrot.slane %v399, 2
    %v407 = vrot.slane %v401, 6
    %v408 = vrot.slane %v402, 4
    %v409 = vrot.slane %v403, 2
    %v410 = vsel %vm37, %v396, %v404
    %v411 = vsel %vm39, %v405, %v406
    %v412 = vsel %vm41, %v410, %v411
    %v413 = vsel %vm37, %v400, %v407
    %v414 = vsel %vm39, %v408, %v409
    %v415 = vsel %vm41, %v413, %v414
    %v418 = vmul.f32 %v393, %v412
    %v419 = vmul.f32 %v394, %v415
    %v420 = vadd.f32 %v389, %v418
    %v421 = vadd.f32 %v390, %v419
    %v422 = vld [vmem:[%s0 + $0x68] sm:$0xff]
    %v423 = vld [vmem:[%s1 + $0x68] sm:$0xff]
    %v424 = vunpack.c.l.bf16 %v422
    %v425 = vunpack.c.h.bf16 %v422
    %v427 = vperm.slane %v423, 0
    %v428 = vperm.slane %v423, 1
    %v429 = vperm.slane %v423, 2
    %v430 = vperm.slane %v423, 3
    %v431 = vperm.slane %v423, 4
    %v432 = vperm.slane %v423, 5
    %v433 = vperm.slane %v423, 6
    %v434 = vperm.slane %v423, 7
    %v435 = vrot.slane %v428, 6
    %v436 = vrot.slane %v429, 4
    %v437 = vrot.slane %v430, 2
    %v438 = vrot.slane %v432, 6
    %v439 = vrot.slane %v433, 4
    %v440 = vrot.slane %v434, 2
    %v441 = vsel %vm37, %v427, %v435
    %v442 = vsel %vm39, %v436, %v437
    %v443 = vsel %vm41, %v441, %v442
    %v444 = vsel %vm37, %v431, %v438
    %v445 = vsel %vm39, %v439, %v440
    %v446 = vsel %vm41, %v444, %v445
    %v449 = vmul.f32 %v424, %v443
    %v450 = vmul.f32 %v425, %v446
    %v451 = vadd.f32 %v420, %v449
    %v452 = vadd.f32 %v421, %v450
    %455 = vst [vmem:[#allocation1] ss:$4 sm:$0xff] %v451
    %s456 = scalar_lea.vmem [#allocation1], 32
    %457 = vst [vmem:[%s456] ss:$4 sm:$0xff] %v452
    %v458 = vld.sshfl [vmem:[#allocation1] sm:$0xff pattern:$0x73625140]
    %v459 = vld.sshfl [vmem:[#allocation1 + $0x8] sm:$0xff pattern:$0x73625140]
    %v460 = vld.sshfl [vmem:[#allocation1 + $0x10] sm:$0xff pattern:$0x73625140]
    %v461 = vld.sshfl [vmem:[#allocation1 + $0x18] sm:$0xff pattern:$0x73625140]
    %v462 = vld.sshfl [vmem:[#allocation1 + $0x20] sm:$0xff pattern:$0x73625140]
    %v463 = vld.sshfl [vmem:[#allocation1 + $0x28] sm:$0xff pattern:$0x73625140]
    %v464 = vld.sshfl [vmem:[#allocation1 + $0x30] sm:$0xff pattern:$0x73625140]
    %v465 = vld.sshfl [vmem:[#allocation1 + $0x38] sm:$0xff pattern:$0x73625140]
    %v474 = vpack.c.bf16 %v458, %v458
    %v475 = vpack.c.bf16 %v459, %v459
    %v476 = vpack.c.bf16 %v460, %v460
    %v477 = vpack.c.bf16 %v461, %v461
    %v478 = vpack.c.bf16 %v462, %v462
    %v479 = vpack.c.bf16 %v463, %v463
    %v480 = vpack.c.bf16 %v464, %v464
    %v481 = vpack.c.bf16 %v465, %v465
    %v482 = vld [vmem:[%s2] sm:$0xf]
    %v483 = vld [vmem:[%s2 + $0x4] sm:$0xf]
    %v484 = vld [vmem:[%s2 + $0x8] sm:$0xf]
    %v485 = vld [vmem:[%s2 + $0xc] sm:$0xf]
    %v486 = vld [vmem:[%s2 + $0x10] sm:$0xf]
    %v487 = vld [vmem:[%s2 + $0x14] sm:$0xf]
    %v488 = vld [vmem:[%s2 + $0x18] sm:$0xf]
    %v489 = vld [vmem:[%s2 + $0x1c] sm:$0xf]
    %v490 = vld [vmem:[%s2 + $0x20] sm:$0xf]
    %v491 = vld [vmem:[%s2 + $0x24] sm:$0xf]
    %v492 = vld [vmem:[%s2 + $0x28] sm:$0xf]
    %v493 = vld [vmem:[%s2 + $0x2c] sm:$0xf]
    %v494 = vld [vmem:[%s2 + $0x30] sm:$0xf]
    %v495 = vld [vmem:[%s2 + $0x34] sm:$0xf]
    %v496 = vld [vmem:[%s2 + $0x38] sm:$0xf]
    %v497 = vld [vmem:[%s2 + $0x3c] sm:$0xf]
    %v498 = vld [vmem:[%s2 + $0x40] sm:$0xf]
    %v499 = vld [vmem:[%s2 + $0x44] sm:$0xf]
    %v500 = vld [vmem:[%s2 + $0x48] sm:$0xf]
    %v501 = vld [vmem:[%s2 + $0x4c] sm:$0xf]
    %v502 = vld [vmem:[%s2 + $0x50] sm:$0xf]
    %v503 = vld [vmem:[%s2 + $0x54] sm:$0xf]
    %v504 = vld [vmem:[%s2 + $0x58] sm:$0xf]
    %v505 = vld [vmem:[%s2 + $0x5c] sm:$0xf]
    %v506 = vld [vmem:[%s2 + $0x60] sm:$0xf]
    %v507 = vld [vmem:[%s2 + $0x64] sm:$0xf]
    %v508 = vld [vmem:[%s2 + $0x68] sm:$0xf]
    %v509 = vld [vmem:[%s2 + $0x6c] sm:$0xf]
    %v510 = vld [vmem:[%s2 + $0x70] sm:$0xf]
    %v511 = vld [vmem:[%s2 + $0x74] sm:$0xf]
    %v512 = vld [vmem:[%s2 + $0x78] sm:$0xf]
    %v513 = vld [vmem:[%s2 + $0x7c] sm:$0xf]
    %v514 = vld [vmem:[%s2 + $0x80] sm:$0xf]
    %v515 = vld [vmem:[%s2 + $0x84] sm:$0xf]
    %v516 = vld [vmem:[%s2 + $0x88] sm:$0xf]
    %v517 = vld [vmem:[%s2 + $0x8c] sm:$0xf]
    %v518 = vld [vmem:[%s2 + $0x90] sm:$0xf]
    %v519 = vld [vmem:[%s2 + $0x94] sm:$0xf]
    %v520 = vld [vmem:[%s2 + $0x98] sm:$0xf]
    %v521 = vld [vmem:[%s2 + $0x9c] sm:$0xf]
    %v522 = vld [vmem:[%s2 + $0xa0] sm:$0xf]
    %v523 = vld [vmem:[%s2 + $0xa4] sm:$0xf]
    %v524 = vld [vmem:[%s2 + $0xa8] sm:$0xf]
    %v525 = vld [vmem:[%s2 + $0xac] sm:$0xf]
    %v526 = vld [vmem:[%s2 + $0xb0] sm:$0xf]
    %v527 = vld [vmem:[%s2 + $0xb4] sm:$0xf]
    %v528 = vld [vmem:[%s2 + $0xb8] sm:$0xf]
    %v529 = vld [vmem:[%s2 + $0xbc] sm:$0xf]
    %v530 = vld [vmem:[%s2 + $0xc0] sm:$0xf]
    %v531 = vld [vmem:[%s2 + $0xc4] sm:$0xf]
    %v532 = vld [vmem:[%s2 + $0xc8] sm:$0xf]
    %v533 = vld [vmem:[%s2 + $0xcc] sm:$0xf]
    %v534 = vld [vmem:[%s2 + $0xd0] sm:$0xf]
    %v535 = vld [vmem:[%s2 + $0xd4] sm:$0xf]
    %v536 = vld [vmem:[%s2 + $0xd8] sm:$0xf]
    %v537 = vld [vmem:[%s2 + $0xdc] sm:$0xf]
    %v538 = vld [vmem:[%s2 + $0xe0] sm:$0xf]
    %v539 = vld [vmem:[%s2 + $0xe4] sm:$0xf]
    %v540 = vld [vmem:[%s2 + $0xe8] sm:$0xf]
    %v541 = vld [vmem:[%s2 + $0xec] sm:$0xf]
    %v542 = vld [vmem:[%s2 + $0xf0] sm:$0xf]
    %v543 = vld [vmem:[%s2 + $0xf4] sm:$0xf]
    %v544 = vld [vmem:[%s2 + $0xf8] sm:$0xf]
    %v545 = vld [vmem:[%s2 + $0xfc] sm:$0xf]
    %v546 = vld [vmem:[%s2 + $0x100] sm:$0xf]
    %v547 = vld [vmem:[%s2 + $0x104] sm:$0xf]
    %v548 = vld [vmem:[%s2 + $0x108] sm:$0xf]
    %v549 = vld [vmem:[%s2 + $0x10c] sm:$0xf]
    %v550 = vld [vmem:[%s2 + $0x110] sm:$0xf]
    %v551 = vld [vmem:[%s2 + $0x114] sm:$0xf]
    %v552 = vld [vmem:[%s2 + $0x118] sm:$0xf]
    %v553 = vld [vmem:[%s2 + $0x11c] sm:$0xf]
    %v554 = vld [vmem:[%s2 + $0x120] sm:$0xf]
    %v555 = vld [vmem:[%s2 + $0x124] sm:$0xf]
    %v556 = vld [vmem:[%s2 + $0x128] sm:$0xf]
    %v557 = vld [vmem:[%s2 + $0x12c] sm:$0xf]
    %v558 = vld [vmem:[%s2 + $0x130] sm:$0xf]
    %v559 = vld [vmem:[%s2 + $0x134] sm:$0xf]
    %v560 = vld [vmem:[%s2 + $0x138] sm:$0xf]
    %v561 = vld [vmem:[%s2 + $0x13c] sm:$0xf]
    %v562 = vld [vmem:[%s2 + $0x140] sm:$0xf]
    %v563 = vld [vmem:[%s2 + $0x144] sm:$0xf]
    %v564 = vld [vmem:[%s2 + $0x148] sm:$0xf]
    %v565 = vld [vmem:[%s2 + $0x14c] sm:$0xf]
    %v566 = vld [vmem:[%s2 + $0x150] sm:$0xf]
    %v567 = vld [vmem:[%s2 + $0x154] sm:$0xf]
    %v568 = vld [vmem:[%s2 + $0x158] sm:$0xf]
    %v569 = vld [vmem:[%s2 + $0x15c] sm:$0xf]
    %v570 = vld [vmem:[%s2 + $0x160] sm:$0xf]
    %v571 = vld [vmem:[%s2 + $0x164] sm:$0xf]
    %v572 = vld [vmem:[%s2 + $0x168] sm:$0xf]
    %v573 = vld [vmem:[%s2 + $0x16c] sm:$0xf]
    %v574 = vld [vmem:[%s2 + $0x170] sm:$0xf]
    %v575 = vld [vmem:[%s2 + $0x174] sm:$0xf]
    %v576 = vld [vmem:[%s2 + $0x178] sm:$0xf]
    %v577 = vld [vmem:[%s2 + $0x17c] sm:$0xf]
    %v578 = vld [vmem:[%s2 + $0x180] sm:$0xf]
    %v579 = vld [vmem:[%s2 + $0x184] sm:$0xf]
    %v580 = vld [vmem:[%s2 + $0x188] sm:$0xf]
    %v581 = vld [vmem:[%s2 + $0x18c] sm:$0xf]
    %v582 = vld [vmem:[%s2 + $0x190] sm:$0xf]
    %v583 = vld [vmem:[%s2 + $0x194] sm:$0xf]
    %v584 = vld [vmem:[%s2 + $0x198] sm:$0xf]
    %v585 = vld [vmem:[%s2 + $0x19c] sm:$0xf]
    %v586 = vld [vmem:[%s2 + $0x1a0] sm:$0xf]
    %v587 = vld [vmem:[%s2 + $0x1a4] sm:$0xf]
    %v588 = vld [vmem:[%s2 + $0x1a8] sm:$0xf]
    %v589 = vld [vmem:[%s2 + $0x1ac] sm:$0xf]
    %v590 = vld [vmem:[%s2 + $0x1b0] sm:$0xf]
    %v591 = vld [vmem:[%s2 + $0x1b4] sm:$0xf]
    %v592 = vld [vmem:[%s2 + $0x1b8] sm:$0xf]
    %v593 = vld [vmem:[%s2 + $0x1bc] sm:$0xf]
    %v594 = vld [vmem:[%s2 + $0x1c0] sm:$0xf]
    %v595 = vld [vmem:[%s2 + $0x1c4] sm:$0xf]
    %v596 = vld [vmem:[%s2 + $0x1c8] sm:$0xf]
    %v597 = vld [vmem:[%s2 + $0x1cc] sm:$0xf]
    %v598 = vld [vmem:[%s2 + $0x1d0] sm:$0xf]
    %v599 = vld [vmem:[%s2 + $0x1d4] sm:$0xf]
    %v600 = vld [vmem:[%s2 + $0x1d8] sm:$0xf]
    %v601 = vld [vmem:[%s2 + $0x1dc] sm:$0xf]
    %v602 = vld [vmem:[%s2 + $0x1e0] sm:$0xf]
    %v603 = vld [vmem:[%s2 + $0x1e4] sm:$0xf]
    %v604 = vld [vmem:[%s2 + $0x1e8] sm:$0xf]
    %v605 = vld [vmem:[%s2 + $0x1ec] sm:$0xf]
    %v606 = vld [vmem:[%s2 + $0x1f0] sm:$0xf]
    %v607 = vld [vmem:[%s2 + $0x1f4] sm:$0xf]
    %v608 = vld [vmem:[%s2 + $0x1f8] sm:$0xf]
    %v609 = vld [vmem:[%s2 + $0x1fc] sm:$0xf]
    %v610 = vld [vmem:[%s3] sm:$0x1]
    %v612 = vperm.slane %v610, 0
    %v742 = vunpack.c.l.b16 %v482
    %v743 = vunpack.c.l.b16 %v483
    %v744 = vunpack.c.l.b16 %v484
    %v745 = vunpack.c.l.b16 %v485
    %v746 = vunpack.c.l.b16 %v486
    %v747 = vunpack.c.l.b16 %v487
    %v748 = vunpack.c.l.b16 %v488
    %v749 = vunpack.c.l.b16 %v489
    %v750 = vunpack.c.l.b16 %v490
    %v751 = vunpack.c.l.b16 %v491
    %v752 = vunpack.c.l.b16 %v492
    %v753 = vunpack.c.l.b16 %v493
    %v754 = vunpack.c.l.b16 %v494
    %v755 = vunpack.c.l.b16 %v495
    %v756 = vunpack.c.l.b16 %v496
    %v757 = vunpack.c.l.b16 %v497
    %v758 = vunpack.c.l.b16 %v498
    %v759 = vunpack.c.l.b16 %v499
    %v760 = vunpack.c.l.b16 %v500
    %v761 = vunpack.c.l.b16 %v501
    %v762 = vunpack.c.l.b16 %v502
    %v763 = vunpack.c.l.b16 %v503
    %v764 = vunpack.c.l.b16 %v504
    %v765 = vunpack.c.l.b16 %v505
    %v766 = vunpack.c.l.b16 %v506
    %v767 = vunpack.c.l.b16 %v507
    %v768 = vunpack.c.l.b16 %v508
    %v769 = vunpack.c.l.b16 %v509
    %v770 = vunpack.c.l.b16 %v510
    %v771 = vunpack.c.l.b16 %v511
    %v772 = vunpack.c.l.b16 %v512
    %v773 = vunpack.c.l.b16 %v513
    %v774 = vunpack.c.l.b16 %v514
    %v775 = vunpack.c.l.b16 %v515
    %v776 = vunpack.c.l.b16 %v516
    %v777 = vunpack.c.l.b16 %v517
    %v778 = vunpack.c.l.b16 %v518
    %v779 = vunpack.c.l.b16 %v519
    %v780 = vunpack.c.l.b16 %v520
    %v781 = vunpack.c.l.b16 %v521
    %v782 = vunpack.c.l.b16 %v522
    %v783 = vunpack.c.l.b16 %v523
    %v784 = vunpack.c.l.b16 %v524
    %v785 = vunpack.c.l.b16 %v525
    %v786 = vunpack.c.l.b16 %v526
    %v787 = vunpack.c.l.b16 %v527
    %v788 = vunpack.c.l.b16 %v528
    %v789 = vunpack.c.l.b16 %v529
    %v790 = vunpack.c.l.b16 %v530
    %v791 = vunpack.c.l.b16 %v531
    %v792 = vunpack.c.l.b16 %v532
    %v793 = vunpack.c.l.b16 %v533
    %v794 = vunpack.c.l.b16 %v534
    %v795 = vunpack.c.l.b16 %v535
    %v796 = vunpack.c.l.b16 %v536
    %v797 = vunpack.c.l.b16 %v537
    %v798 = vunpack.c.l.b16 %v538
    %v799 = vunpack.c.l.b16 %v539
    %v800 = vunpack.c.l.b16 %v540
    %v801 = vunpack.c.l.b16 %v541
    %v802 = vunpack.c.l.b16 %v542
    %v803 = vunpack.c.l.b16 %v543
    %v804 = vunpack.c.l.b16 %v544
    %v805 = vunpack.c.l.b16 %v545
    %v806 = vunpack.c.l.b16 %v546
    %v807 = vunpack.c.l.b16 %v547
    %v808 = vunpack.c.l.b16 %v548
    %v809 = vunpack.c.l.b16 %v549
    %v810 = vunpack.c.l.b16 %v550
    %v811 = vunpack.c.l.b16 %v551
    %v812 = vunpack.c.l.b16 %v552
    %v813 = vunpack.c.l.b16 %v553
    %v814 = vunpack.c.l.b16 %v554
    %v815 = vunpack.c.l.b16 %v555
    %v816 = vunpack.c.l.b16 %v556
    %v817 = vunpack.c.l.b16 %v557
    %v818 = vunpack.c.l.b16 %v558
    %v819 = vunpack.c.l.b16 %v559
    %v820 = vunpack.c.l.b16 %v560
    %v821 = vunpack.c.l.b16 %v561
    %v822 = vunpack.c.l.b16 %v562
    %v823 = vunpack.c.l.b16 %v563
    %v824 = vunpack.c.l.b16 %v564
    %v825 = vunpack.c.l.b16 %v565
    %v826 = vunpack.c.l.b16 %v566
    %v827 = vunpack.c.l.b16 %v567
    %v828 = vunpack.c.l.b16 %v568
    %v829 = vunpack.c.l.b16 %v569
    %v830 = vunpack.c.l.b16 %v570
    %v831 = vunpack.c.l.b16 %v571
    %v832 = vunpack.c.l.b16 %v572
    %v833 = vunpack.c.l.b16 %v573
    %v834 = vunpack.c.l.b16 %v574
    %v835 = vunpack.c.l.b16 %v575
    %v836 = vunpack.c.l.b16 %v576
    %v837 = vunpack.c.l.b16 %v577
    %v838 = vunpack.c.l.b16 %v578
    %v839 = vunpack.c.l.b16 %v579
    %v840 = vunpack.c.l.b16 %v580
    %v841 = vunpack.c.l.b16 %v581
    %v842 = vunpack.c.l.b16 %v582
    %v843 = vunpack.c.l.b16 %v583
    %v844 = vunpack.c.l.b16 %v584
    %v845 = vunpack.c.l.b16 %v585
    %v846 = vunpack.c.l.b16 %v586
    %v847 = vunpack.c.l.b16 %v587
    %v848 = vunpack.c.l.b16 %v588
    %v849 = vunpack.c.l.b16 %v589
    %v850 = vunpack.c.l.b16 %v590
    %v851 = vunpack.c.l.b16 %v591
    %v852 = vunpack.c.l.b16 %v592
    %v853 = vunpack.c.l.b16 %v593
    %v854 = vunpack.c.l.b16 %v594
    %v855 = vunpack.c.l.b16 %v595
    %v856 = vunpack.c.l.b16 %v596
    %v857 = vunpack.c.l.b16 %v597
    %v858 = vunpack.c.l.b16 %v598
    %v859 = vunpack.c.l.b16 %v599
    %v860 = vunpack.c.l.b16 %v600
    %v861 = vunpack.c.l.b16 %v601
    %v862 = vunpack.c.l.b16 %v602
    %v863 = vunpack.c.l.b16 %v603
    %v864 = vunpack.c.l.b16 %v604
    %v865 = vunpack.c.l.b16 %v605
    %v866 = vunpack.c.l.b16 %v606
    %v867 = vunpack.c.l.b16 %v607
    %v868 = vunpack.c.l.b16 %v608
    %v869 = vunpack.c.l.b16 %v609
    %v870 = vpack.c.b16 %v743, %v742
    %v871 = vpack.c.b16 %v745, %v744
    %v872 = vpack.c.b16 %v747, %v746
    %v873 = vpack.c.b16 %v749, %v748
    %v874 = vpack.c.b16 %v751, %v750
    %v875 = vpack.c.b16 %v753, %v752
    %v876 = vpack.c.b16 %v755, %v754
    %v877 = vpack.c.b16 %v757, %v756
    %v878 = vpack.c.b16 %v759, %v758
    %v879 = vpack.c.b16 %v761, %v760
    %v880 = vpack.c.b16 %v763, %v762
    %v881 = vpack.c.b16 %v765, %v764
    %v882 = vpack.c.b16 %v767, %v766
    %v883 = vpack.c.b16 %v769, %v768
    %v884 = vpack.c.b16 %v771, %v770
    %v885 = vpack.c.b16 %v773, %v772
    %v886 = vpack.c.b16 %v775, %v774
    %v887 = vpack.c.b16 %v777, %v776
    %v888 = vpack.c.b16 %v779, %v778
    %v889 = vpack.c.b16 %v781, %v780
    %v890 = vpack.c.b16 %v783, %v782
    %v891 = vpack.c.b16 %v785, %v784
    %v892 = vpack.c.b16 %v787, %v786
    %v893 = vpack.c.b16 %v789, %v788
    %v894 = vpack.c.b16 %v791, %v790
    %v895 = vpack.c.b16 %v793, %v792
    %v896 = vpack.c.b16 %v795, %v794
    %v897 = vpack.c.b16 %v797, %v796
    %v898 = vpack.c.b16 %v799, %v798
    %v899 = vpack.c.b16 %v801, %v800
    %v900 = vpack.c.b16 %v803, %v802
    %v901 = vpack.c.b16 %v805, %v804
    %v902 = vpack.c.b16 %v807, %v806
    %v903 = vpack.c.b16 %v809, %v808
    %v904 = vpack.c.b16 %v811, %v810
    %v905 = vpack.c.b16 %v813, %v812
    %v906 = vpack.c.b16 %v815, %v814
    %v907 = vpack.c.b16 %v817, %v816
    %v908 = vpack.c.b16 %v819, %v818
    %v909 = vpack.c.b16 %v821, %v820
    %v910 = vpack.c.b16 %v823, %v822
    %v911 = vpack.c.b16 %v825, %v824
    %v912 = vpack.c.b16 %v827, %v826
    %v913 = vpack.c.b16 %v829, %v828
    %v914 = vpack.c.b16 %v831, %v830
    %v915 = vpack.c.b16 %v833, %v832
    %v916 = vpack.c.b16 %v835, %v834
    %v917 = vpack.c.b16 %v837, %v836
    %v918 = vpack.c.b16 %v839, %v838
    %v919 = vpack.c.b16 %v841, %v840
    %v920 = vpack.c.b16 %v843, %v842
    %v921 = vpack.c.b16 %v845, %v844
    %v922 = vpack.c.b16 %v847, %v846
    %v923 = vpack.c.b16 %v849, %v848
    %v924 = vpack.c.b16 %v851, %v850
    %v925 = vpack.c.b16 %v853, %v852
    %v926 = vpack.c.b16 %v855, %v854
    %v927 = vpack.c.b16 %v857, %v856
    %v928 = vpack.c.b16 %v859, %v858
    %v929 = vpack.c.b16 %v861, %v860
    %v930 = vpack.c.b16 %v863, %v862
    %v931 = vpack.c.b16 %v865, %v864
    %v932 = vpack.c.b16 %v867, %v866
    %v933 = vpack.c.b16 %v869, %v868
    %998 = vmatpush.bf16.msra.mxu0 %v877
    %999 = vmatpush.bf16.msra.mxu0 %v876
    %1000 = vmatpush.bf16.msra.mxu0 %v875
    %1001 = vmatpush.bf16.msra.mxu0 %v874
    %1002 = vmatpush.bf16.msra.mxu0 %v873
    %1003 = vmatpush.bf16.msra.mxu0 %v872
    %1004 = vmatpush.bf16.msra.mxu0 %v871
    %1005 = vmatpush.bf16.msra.mxu0 %v870
    %1006 = vmatmul.bf16.gmra.mxu0 %v474
    %v1007 = vpop.f32.mrf.mxu0
    %v1008 = vadd.f32 %v612, %v1007
    %v1009 = vpop.f32.mrf.mxu0
    %1010 = vdwg.mxu0
    %1011 = vmatpush.bf16.msra.mxu0 %v885
    %1012 = vmatpush.bf16.msra.mxu0 %v884
    %1013 = vmatpush.bf16.msra.mxu0 %v883
    %1014 = vmatpush.bf16.msra.mxu0 %v882
    %1015 = vmatpush.bf16.msra.mxu0 %v881
    %1016 = vmatpush.bf16.msra.mxu0 %v880
    %1017 = vmatpush.bf16.msra.mxu0 %v879
    %1018 = vmatpush.bf16.msra.mxu0 %v878
    %1019 = vmatmul.bf16.gmra.mxu0 %v475
    %v1020 = vpop.f32.mrf.mxu0
    %v1021 = vadd.f32 %v1008, %v1020
    %v1022 = vpop.f32.mrf.mxu0
    %1023 = vdwg.mxu0
    %1024 = vmatpush.bf16.msra.mxu0 %v893
    %1025 = vmatpush.bf16.msra.mxu0 %v892
    %1026 = vmatpush.bf16.msra.mxu0 %v891
    %1027 = vmatpush.bf16.msra.mxu0 %v890
    %1028 = vmatpush.bf16.msra.mxu0 %v889
    %1029 = vmatpush.bf16.msra.mxu0 %v888
    %1030 = vmatpush.bf16.msra.mxu0 %v887
    %1031 = vmatpush.bf16.msra.mxu0 %v886
    %1032 = vmatmul.bf16.gmra.mxu0 %v476
    %v1033 = vpop.f32.mrf.mxu0
    %v1034 = vadd.f32 %v1021, %v1033
    %v1035 = vpop.f32.mrf.mxu0
    %1036 = vdwg.mxu0
    %1037 = vmatpush.bf16.msra.mxu0 %v901
    %1038 = vmatpush.bf16.msra.mxu0 %v900
    %1039 = vmatpush.bf16.msra.mxu0 %v899
    %1040 = vmatpush.bf16.msra.mxu0 %v898
    %1041 = vmatpush.bf16.msra.mxu0 %v897
    %1042 = vmatpush.bf16.msra.mxu0 %v896
    %1043 = vmatpush.bf16.msra.mxu0 %v895
    %1044 = vmatpush.bf16.msra.mxu0 %v894
    %1045 = vmatmul.bf16.gmra.mxu0 %v477
    %v1046 = vpop.f32.mrf.mxu0
    %v1047 = vadd.f32 %v1034, %v1046
    %v1048 = vpop.f32.mrf.mxu0
    %1049 = vdwg.mxu0
    %1050 = vmatpush.bf16.msra.mxu0 %v909
    %1051 = vmatpush.bf16.msra.mxu0 %v908
    %1052 = vmatpush.bf16.msra.mxu0 %v907
    %1053 = vmatpush.bf16.msra.mxu0 %v906
    %1054 = vmatpush.bf16.msra.mxu0 %v905
    %1055 = vmatpush.bf16.msra.mxu0 %v904
    %1056 = vmatpush.bf16.msra.mxu0 %v903
    %1057 = vmatpush.bf16.msra.mxu0 %v902
    %1058 = vmatmul.bf16.gmra.mxu0 %v478
    %v1059 = vpop.f32.mrf.mxu0
    %v1060 = vadd.f32 %v1047, %v1059
    %v1061 = vpop.f32.mrf.mxu0
    %1062 = vdwg.mxu0
    %1063 = vmatpush.bf16.msra.mxu0 %v917
    %1064 = vmatpush.bf16.msra.mxu0 %v916
    %1065 = vmatpush.bf16.msra.mxu0 %v915
    %1066 = vmatpush.bf16.msra.mxu0 %v914
    %1067 = vmatpush.bf16.msra.mxu0 %v913
    %1068 = vmatpush.bf16.msra.mxu0 %v912
    %1069 = vmatpush.bf16.msra.mxu0 %v911
    %1070 = vmatpush.bf16.msra.mxu0 %v910
    %1071 = vmatmul.bf16.gmra.mxu0 %v479
    %v1072 = vpop.f32.mrf.mxu0
    %v1073 = vadd.f32 %v1060, %v1072
    %v1074 = vpop.f32.mrf.mxu0
    %1075 = vdwg.mxu0
    %1076 = vmatpush.bf16.msra.mxu0 %v925
    %1077 = vmatpush.bf16.msra.mxu0 %v924
    %1078 = vmatpush.bf16.msra.mxu0 %v923
    %1079 = vmatpush.bf16.msra.mxu0 %v922
    %1080 = vmatpush.bf16.msra.mxu0 %v921
    %1081 = vmatpush.bf16.msra.mxu0 %v920
    %1082 = vmatpush.bf16.msra.mxu0 %v919
    %1083 = vmatpush.bf16.msra.mxu0 %v918
    %1084 = vmatmul.bf16.gmra.mxu0 %v480
    %v1085 = vpop.f32.mrf.mxu0
    %v1086 = vadd.f32 %v1073, %v1085
    %v1087 = vpop.f32.mrf.mxu0
    %1088 = vdwg.mxu0
    %1089 = vmatpush.bf16.msra.mxu0 %v933
    %1090 = vmatpush.bf16.msra.mxu0 %v932
    %1091 = vmatpush.bf16.msra.mxu0 %v931
    %1092 = vmatpush.bf16.msra.mxu0 %v930
    %1093 = vmatpush.bf16.msra.mxu0 %v929
    %1094 = vmatpush.bf16.msra.mxu0 %v928
    %1095 = vmatpush.bf16.msra.mxu0 %v927
    %1096 = vmatpush.bf16.msra.mxu0 %v926
    %1097 = vmatmul.bf16.gmra.mxu0 %v481
    %v1098 = vpop.f32.mrf.mxu0
    %v1099 = vadd.f32 %v1086, %v1098
    %v1100 = vpop.f32.mrf.mxu0
    %1101 = vdwg.mxu0
    %1102 = vst [vmem:[#allocation2] sm:$0x3] %v1099
    // Predicated region
    $region18: #{classify_network_pallas.1} parent=1 // pred_check
      _
    $region19: #{classify_network_pallas.1} parent=1 // pred_check_branch
      %1104 = sbr.rel (0) target = $region21
    $region20: #{classify_network_pallas.1} parent=1 // pred_region
      %1106 = vsyncadd [#allocation3], 0
      %s1108 = sshll.u32 [#allocation2], 4
      %s1109 = int_to_ptr.vmem [resolvable:$true] %s1108
      %s1110 = sshll.u32 %s4, 4
      %s1111 = int_to_ptr.hbm [resolvable:$true] %s1110
      %1113 = dma.vmem_to_hbm [thread:$0]  %s1109, 32, %s1111, [#allocation3]
    $region21: #{classify_network_pallas.1} parent=1 // pred_fallthru
      _
    // Predicated region
    $region22: #{classify_network_pallas.1} parent=1 // pred_check
      _
    $region23: #{classify_network_pallas.1} parent=1 // pred_check_branch
      %1115 = sbr.rel (0) target = $region25
    $region24: #{classify_network_pallas.1} parent=1 // pred_region
      %1117 = dma.done [#allocation3], 32
    $region25: #{classify_network_pallas.1} parent=1 // pred_fallthru
      _
    %1118 = vsyncpa [#allocation3], 1

</llo_original>
